<compile_context>
chip_gen: v5e
topology: v5e:2x2
jax: 0.10.0
libtpu: 0.0.40
codegen_flags: <defaults>
</compile_context>

<pallas_src>
import jax
import jax.numpy as jnp
from jax.experimental import pallas as pl
from jax.experimental.pallas import tpu as pltpu

NHEAD = 5
LANE = 128
SUBLANE = 8


def _round_up(x, m):
    return ((x + m - 1) // m) * m


def _pick_block_b(B, S, E, H, Hp, *, vmem_budget_bytes=20 << 20):
    """Pick the per-grid-step batch block.

    * ret is a 2-D (block_b, H) block -> block_b % 8 == 0 or block_b == B.
    * keep double-buffered I/O blocks + the dominant in-kernel intermediates
      (fused qkv, the pairwise q*k product) under ~20 MiB (fits v7x's 64 MiB
      physical VMEM with headroom; vmem_limit_bytes is raised accordingly).
    * prefer >= 2 (even) grid steps so both v7x TensorCores get work, as long
      as each step keeps >= ~1024 rows to amortize the ~0.35 us/step overhead.
    """
    bytes_per_batch = 4 * (
        2 * S * E            # x block (double-buffered)
        + 2 * S * H          # vec block (double-buffered)
        + 2 * H              # ret block (double-buffered)
        + S * 3 * Hp         # fused qkv intermediate
        + S * S * Hp         # pairwise q*k product (largest intermediate)
        + 3 * S * Hp)        # wexp / scores / broadcast slack
    cap = max(1, vmem_budget_bytes // bytes_per_batch)

    divisors = [d for d in range(1, B + 1) if B % d == 0]
    cands = [d for d in divisors if (d % SUBLANE == 0 or d == B) and d <= cap]
    if not cands:
        return B  # pathological B (prime & over budget): single big block
    best = max(cands)
    if B // best < 2:
        for d in sorted(cands, reverse=True):
            if B // d >= 2 and (B // d) % 2 == 0 and d * S >= 1024:
                best = d
                break
    return best


def mtransformer_forward(x, params, *, nhead=NHEAD, block_b=None):
    B, S, E = x.shape
    H = params["wt"].shape[1]
    assert H % nhead == 0, "hidden_dim must be divided evenly by nhead."
    dh = H // nhead
    Hp = _round_up(H, LANE)          # q/k/v column blocks padded to 128-aligned lanes
    scale = 1.0 / float(dh) ** 0.5
    f32 = jnp.float32

    if block_b is None:
        block_b = _pick_block_b(B, S, E, H, Hp)
    assert B % block_b == 0
    grid = (B // block_b,)

    # ---- host-side weight packing (one-time, tiny) -------------------------
    def pad_cols(w, n):
        w = jnp.asarray(w, f32)
        return jnp.pad(w, ((0, 0), (0, n - w.shape[1])))

    wt = jnp.asarray(params["wt"], f32)                         # (E, H) true width
    bt_b = jnp.asarray(params["bt"], f32).reshape(1, H)
    # 1/sqrt(dh) folded into wq/bq: relu((q/sqrt(dh)) . k) == reference exactly.
    wqkv = jnp.concatenate([pad_cols(jnp.asarray(params["wq"], f32) * scale, Hp),
                            pad_cols(params["wk"], Hp),
                            pad_cols(params["wv"], Hp)], axis=1)            # (H, 3*Hp)
    bqkv = jnp.concatenate([pad_cols(jnp.asarray(params["bq"], f32).reshape(1, H) * scale, Hp),
                            pad_cols(jnp.asarray(params["bk"], f32).reshape(1, H), Hp),
                            pad_cols(jnp.asarray(params["bv"], f32).reshape(1, H), Hp)],
                           axis=1)                                           # (1, 3*Hp)

    # Head-indicator matrices (lane-layout-preserving attention; works for any dh):
    #   P[c, h]   = 1 if channel c belongs to head h (and c < H) else 0
    #   PT[h, c]  = P[c, h] / S   (the sequence-mean 1/S factor folded in)
    c = jnp.arange(Hp)
    p_mat = ((c[:, None] // dh == jnp.arange(nhead)[None, :]) &
             (c[:, None] < H)).astype(f32)                                   # (Hp, nhead)
    pt_mat = p_mat.T * (1.0 / S)                                             # (nhead, Hp)

    # ---- kernel -------------------------------------------------------------
    def kernel(x_ref, wt_ref, btr_ref, wqkv_ref, bqkv_ref, p_ref, pt_ref,
               ret_ref, vec_ref):
        bt_, s, e = x_ref.shape
        m = bt_ * s
        h = vec_ref.shape[-1]
        hp = p_ref.shape[0]

        # transfer: one (M, E) @ (E, H) matmul over all rows of the block;
        # vec is stored at true width H (no lane padding, no wrapper slice).
        x2 = x_ref[...].reshape(m, e)
        vec = jnp.dot(x2, wt_ref[...],
                      preferred_element_type=jnp.float32) + btr_ref[...]
        vec_ref[...] = vec.reshape(bt_, s, h).astype(vec_ref.dtype)

        # fused q/k/v projection: one (M, H) @ (H, 3*Hp) matmul; q/k/v each
        # occupy a 128-aligned column block (zeros in columns H..Hp).
        qkv = jnp.dot(vec, wqkv_ref[...],
                      preferred_element_type=jnp.float32) + bqkv_ref[...]
        q = qkv[:, 0 * hp:1 * hp].reshape(bt_, s, 1, hp)
        k = qkv[:, 1 * hp:2 * hp].reshape(bt_, 1, s, hp)
        v = qkv[:, 2 * hp:3 * hp]                                  # (m, Hp)

        # relu attention via head-indicator matmul (no head transpose, no
        # zero-padded heads, full-depth K = Hp):
        #   scores[b,i,j,h] = sum_c q[b,i,c] k[b,j,c] P[c,h]
        pr = (q * k).reshape(m * s, hp)                            # rows = (b, i, j)
        scores = jnp.dot(pr, p_ref[...], preferred_element_type=jnp.float32)
        # sequence mean folded into the weights: relu, reduce over the query
        # axis i (a major axis -> pure VPU adds); the 1/S factor lives in pt_ref.
        w = jnp.sum(jax.nn.relu(scores).reshape(bt_, s, s, -1), axis=1)  # (b, j, nhead)
        # expand per-head weights back onto the Hp lanes and contract with v
        # over the sequence axis: ret[b,c] = sum_j (w[b,j,head(c)]/S) * v[b,j,c]
        wexp = jnp.dot(w.reshape(m, -1), pt_ref[...],
                       preferred_element_type=jnp.float32)          # (m, Hp)
        ret_full = jnp.sum((wexp * v).reshape(bt_, s, hp), axis=1)  # (b, Hp); cols >= H are 0
        ret_ref[...] = ret_full[:, :ret_ref.shape[-1]].astype(ret_ref.dtype)

    ret, vec = pl.pallas_call(
        kernel,
        out_shape=(
            jax.ShapeDtypeStruct((B, H), jnp.float32),       # ret (true width, 2-D)
            jax.ShapeDtypeStruct((B, S, H), jnp.float32),    # vec after transfer ('to_loss')
        ),
        grid_spec=pltpu.PrefetchScalarGridSpec(
            num_scalar_prefetch=0,
            grid=grid,
            in_specs=[
                pl.BlockSpec((block_b, S, E), lambda i: (i, 0, 0)),   # x block
                pl.BlockSpec((E, H), lambda i: (0, 0)),               # wt   (grid-invariant)
                pl.BlockSpec((1, H), lambda i: (0, 0)),               # bt
                pl.BlockSpec((H, 3 * Hp), lambda i: (0, 0)),          # fused wqkv
                pl.BlockSpec((1, 3 * Hp), lambda i: (0, 0)),          # fused bqkv
                pl.BlockSpec((Hp, nhead), lambda i: (0, 0)),          # head-indicator P
                pl.BlockSpec((nhead, Hp), lambda i: (0, 0)),          # P^T / S
            ],
            out_specs=(
                pl.BlockSpec((block_b, H), lambda i: (i, 0)),
                pl.BlockSpec((block_b, S, H), lambda i: (i, 0, 0)),
            ),
        ),
        compiler_params=pltpu.CompilerParams(
            dimension_semantics=("parallel",),
            vmem_limit_bytes=40 << 20,   # above v5e's 16 MiB scoped default; < v7x 64 MiB phys
        ),
    )(x, wt, bt_b, wqkv, bqkv, p_mat, pt_mat)

    extra_output = {"to_loss": [vec]}    # 'target' is batch data, not computed here
    return ret, extra_output


def _reference_forward(x, params, nhead=NHEAD):
    """Pure-JAX reference for correctness checking."""
    vec = x @ params["wt"] + params["bt"]
    q = vec @ params["wq"] + params["bq"]
    k = vec @ params["wk"] + params["bk"]
    v = vec @ params["wv"] + params["bv"]
    B, S, H = q.shape
    dh = H // nhead
    qh = q.reshape(B, S, nhead, dh).transpose(0, 2, 1, 3)
    kh = k.reshape(B, S, nhead, dh).transpose(0, 2, 1, 3)
    vh = v.reshape(B, S, nhead, dh).transpose(0, 2, 1, 3)
    scores = jax.nn.relu(jnp.einsum("bhqd,bhkd->bhqk", qh, kh) / (dh ** 0.5))
    out = jnp.einsum("bhqk,bhkd->bhqd", scores, vh)
    out = out.transpose(0, 2, 1, 3).reshape(B, S, H)
    return jnp.mean(out, axis=1), vec


if __name__ == "__main__":
    B, S, E, H = 2, 8, 32, 40  # hidden_dim must be divisible by nhead=5

    key = jax.random.PRNGKey(0)
    keys = jax.random.split(key, 10)

    def xavier(k, shape):
        fan_in, fan_out = shape
        bound = (6.0 / (fan_in + fan_out)) ** 0.5
        return jax.random.uniform(k, shape, jnp.float32, -bound, bound)

    params = {
        "wt": xavier(keys[0], (E, H)),
        "bt": jax.random.uniform(keys[1], (1, H), jnp.float32, -0.1, 0.1),
        "wq": xavier(keys[2], (H, H)),
        "bq": jax.random.uniform(keys[3], (1, H), jnp.float32, -0.1, 0.1),
        "wk": xavier(keys[4], (H, H)),
        "bk": jax.random.uniform(keys[5], (1, H), jnp.float32, -0.1, 0.1),
        "wv": xavier(keys[6], (H, H)),
        "bv": jax.random.uniform(keys[7], (1, H), jnp.float32, -0.1, 0.1),
    }
    x = jax.random.normal(keys[8], (B, S, E), jnp.float32)

    ret, extra = mtransformer_forward(x, params)
    jax.block_until_ready(ret)
    jax.block_until_ready(extra["to_loss"][0])

    ret_ref, vec_ref = _reference_forward(x, params)
    assert ret.shape == (B, H)
    assert extra["to_loss"][0].shape == (B, S, H)
    assert jnp.allclose(ret, ret_ref, atol=1e-4, rtol=1e-4)
    assert jnp.allclose(extra["to_loss"][0], vec_ref, atol=1e-4, rtol=1e-4)

    print("KERNEL_OK")
</pallas_src>

<mosaic_0001>
module attributes {stable_mosaic.version = 11 : i64} {
  func.func @kernel(%arg0: i32, %arg1: memref<2x8x32xf32, #tpu.memory_space<vmem>>, %arg2: memref<32x40xf32, #tpu.memory_space<vmem>>, %arg3: memref<1x40xf32, #tpu.memory_space<vmem>>, %arg4: memref<40x384xf32, #tpu.memory_space<vmem>>, %arg5: memref<1x384xf32, #tpu.memory_space<vmem>>, %arg6: memref<128x5xf32, #tpu.memory_space<vmem>>, %arg7: memref<5x128xf32, #tpu.memory_space<vmem>>, %arg8: memref<2x40xf32, #tpu.memory_space<vmem>>, %arg9: memref<2x8x40xf32, #tpu.memory_space<vmem>>) attributes {dimension_semantics = [#tpu.dimension_semantics<parallel>], iteration_bounds = array<i64: 1>, scalar_prefetch = 0 : i64, scratch_operands = 0 : i64, tpu.core_type = #tpu.core_type<tc>, window_params = [{transform_indices = @transform_0, window_bounds = array<i64: 2, 8, 32>}, {pipeline_mode = #tpu.pipeline_mode<synchronous>, transform_indices = @transform_1, window_bounds = array<i64: 32, 40>}, {pipeline_mode = #tpu.pipeline_mode<synchronous>, transform_indices = @transform_2, window_bounds = array<i64: 1, 40>}, {pipeline_mode = #tpu.pipeline_mode<synchronous>, transform_indices = @transform_3, window_bounds = array<i64: 40, 384>}, {pipeline_mode = #tpu.pipeline_mode<synchronous>, transform_indices = @transform_4, window_bounds = array<i64: 1, 384>}, {pipeline_mode = #tpu.pipeline_mode<synchronous>, transform_indices = @transform_5, window_bounds = array<i64: 128, 5>}, {pipeline_mode = #tpu.pipeline_mode<synchronous>, transform_indices = @transform_6, window_bounds = array<i64: 5, 128>}, {transform_indices = @transform_7, window_bounds = array<i64: 2, 40>}, {transform_indices = @transform_8, window_bounds = array<i64: 2, 8, 40>}]} {
    %c0 = arith.constant 0 : index
    %c0_0 = arith.constant 0 : index
    %c0_1 = arith.constant 0 : index
    %0 = vector.load %arg1[%c0, %c0_0, %c0_1] : memref<2x8x32xf32, #tpu.memory_space<vmem>>, vector<2x8x32xf32>
    %1 = vector.shape_cast %0 : vector<2x8x32xf32> to vector<16x32xf32>
    %c0_2 = arith.constant 0 : index
    %c0_3 = arith.constant 0 : index
    %2 = vector.load %arg2[%c0_2, %c0_3] : memref<32x40xf32, #tpu.memory_space<vmem>>, vector<32x40xf32>
    %cst = arith.constant dense<0.000000e+00> : vector<16x40xf32>
    %3 = tpu.matmul %1, %2, %cst {dimension_numbers = #tpu.dot_dimension_numbers<[1], [0], [0], [1], [0, 0, 1, 1], [], []>} : vector<16x32xf32>, vector<32x40xf32>, vector<16x40xf32> -> vector<16x40xf32>
    %c0_4 = arith.constant 0 : index
    %c0_5 = arith.constant 0 : index
    %4 = vector.load %arg3[%c0_4, %c0_5] : memref<1x40xf32, #tpu.memory_space<vmem>>, vector<1x40xf32>
    %5 = vector.broadcast %4 : vector<1x40xf32> to vector<16x40xf32>
    %6 = arith.addf %3, %5 : vector<16x40xf32>
    %7 = vector.shape_cast %6 : vector<16x40xf32> to vector<2x8x40xf32>
    %c0_6 = arith.constant 0 : index
    %c0_7 = arith.constant 0 : index
    %c0_8 = arith.constant 0 : index
    %8 = vector.load %arg9[%c0_6, %c0_7, %c0_8] : memref<2x8x40xf32, #tpu.memory_space<vmem>>, vector<2x8x40xf32>
    tpu.vector_store %arg9[%c0_6, %c0_7, %c0_8], %7 {strides = array<i32>} : memref<2x8x40xf32, #tpu.memory_space<vmem>>, vector<2x8x40xf32>,
    %c0_9 = arith.constant 0 : index
    %c0_10 = arith.constant 0 : index
    %9 = vector.load %arg4[%c0_9, %c0_10] : memref<40x384xf32, #tpu.memory_space<vmem>>, vector<40x384xf32>
    %cst_11 = arith.constant dense<0.000000e+00> : vector<16x384xf32>
    %10 = tpu.matmul %6, %9, %cst_11 {dimension_numbers = #tpu.dot_dimension_numbers<[1], [0], [0], [1], [0, 0, 1, 1], [], []>} : vector<16x40xf32>, vector<40x384xf32>, vector<16x384xf32> -> vector<16x384xf32>
    %c0_12 = arith.constant 0 : index
    %c0_13 = arith.constant 0 : index
    %11 = vector.load %arg5[%c0_12, %c0_13] : memref<1x384xf32, #tpu.memory_space<vmem>>, vector<1x384xf32>
    %12 = vector.broadcast %11 : vector<1x384xf32> to vector<16x384xf32>
    %13 = arith.addf %10, %12 : vector<16x384xf32>
    %14 = vector.extract_strided_slice %13 {offsets = [0, 0], sizes = [16, 128], strides = [1, 1]} : vector<16x384xf32> to vector<16x128xf32>
    %15 = vector.shape_cast %14 : vector<16x128xf32> to vector<2x8x1x128xf32>
    %16 = vector.extract_strided_slice %13 {offsets = [0, 128], sizes = [16, 128], strides = [1, 1]} : vector<16x384xf32> to vector<16x128xf32>
    %17 = vector.shape_cast %16 : vector<16x128xf32> to vector<2x1x8x128xf32>
    %18 = vector.extract_strided_slice %13 {offsets = [0, 256], sizes = [16, 128], strides = [1, 1]} : vector<16x384xf32> to vector<16x128xf32>
    %19 = vector.broadcast %15 : vector<2x8x1x128xf32> to vector<2x8x8x128xf32>
    %20 = vector.broadcast %17 : vector<2x1x8x128xf32> to vector<2x8x8x128xf32>
    %21 = arith.mulf %19, %20 : vector<2x8x8x128xf32>
    %22 = vector.shape_cast %21 : vector<2x8x8x128xf32> to vector<128x128xf32>
    %c0_14 = arith.constant 0 : index
    %c0_15 = arith.constant 0 : index
    %23 = vector.load %arg6[%c0_14, %c0_15] : memref<128x5xf32, #tpu.memory_space<vmem>>, vector<128x5xf32>
    %cst_16 = arith.constant dense<0.000000e+00> : vector<128x5xf32>
    %24 = tpu.matmul %22, %23, %cst_16 {dimension_numbers = #tpu.dot_dimension_numbers<[1], [0], [0], [1], [0, 0, 1, 1], [], []>} : vector<128x128xf32>, vector<128x5xf32>, vector<128x5xf32> -> vector<128x5xf32>
    %cst_17 = arith.constant 0.000000e+00 : f32
    %25 = vector.broadcast %cst_17 : f32 to vector<128x5xf32>
    %26 = arith.maximumf %24, %25 : vector<128x5xf32>
    %27 = vector.shape_cast %26 : vector<128x5xf32> to vector<2x8x8x5xf32>
    %cst_18 = arith.constant dense<0.000000e+00> : vector<2x8x5xf32>
    %28 = vector.multi_reduction <add>, %27, %cst_18 [1] : vector<2x8x8x5xf32> to vector<2x8x5xf32>
    %29 = vector.shape_cast %28 : vector<2x8x5xf32> to vector<16x5xf32>
    %c0_19 = arith.constant 0 : index
    %c0_20 = arith.constant 0 : index
    %30 = vector.load %arg7[%c0_19, %c0_20] : memref<5x128xf32, #tpu.memory_space<vmem>>, vector<5x128xf32>
    %cst_21 = arith.constant dense<0.000000e+00> : vector<16x128xf32>
    %31 = tpu.matmul %29, %30, %cst_21 {dimension_numbers = #tpu.dot_dimension_numbers<[1], [0], [0], [1], [0, 0, 1, 1], [], []>} : vector<16x5xf32>, vector<5x128xf32>, vector<16x128xf32> -> vector<16x128xf32>
    %32 = arith.mulf %31, %18 : vector<16x128xf32>
    %33 = vector.shape_cast %32 : vector<16x128xf32> to vector<2x8x128xf32>
    %cst_22 = arith.constant dense<0.000000e+00> : vector<2x128xf32>
    %34 = vector.multi_reduction <add>, %33, %cst_22 [1] : vector<2x8x128xf32> to vector<2x128xf32>
    %35 = vector.extract_strided_slice %34 {offsets = [0, 0], sizes = [2, 40], strides = [1, 1]} : vector<2x128xf32> to vector<2x40xf32>
    %c0_23 = arith.constant 0 : index
    %c0_24 = arith.constant 0 : index
    %36 = vector.load %arg8[%c0_23, %c0_24] : memref<2x40xf32, #tpu.memory_space<vmem>>, vector<2x40xf32>
    tpu.vector_store %arg8[%c0_23, %c0_24], %35 {strides = array<i32>} : memref<2x40xf32, #tpu.memory_space<vmem>>, vector<2x40xf32>,
    return
  }
  func.func @transform_0(%arg0: i32) -> (i32, i32, i32) {
    %c0_i32 = arith.constant 0 : i32
    %c0_i32_0 = arith.constant 0 : i32
    %c0_i32_1 = arith.constant 0 : i32
    return %arg0, %c0_i32, %c0_i32_0 : i32, i32, i32
  }
  func.func @transform_1(%arg0: i32) -> (i32, i32) {
    %c0_i32 = arith.constant 0 : i32
    %c0_i32_0 = arith.constant 0 : i32
    %c0_i32_1 = arith.constant 0 : i32
    return %c0_i32, %c0_i32_0 : i32, i32
  }
  func.func @transform_2(%arg0: i32) -> (i32, i32) {
    %c0_i32 = arith.constant 0 : i32
    %c0_i32_0 = arith.constant 0 : i32
    %c0_i32_1 = arith.constant 0 : i32
    return %c0_i32, %c0_i32_0 : i32, i32
  }
  func.func @transform_3(%arg0: i32) -> (i32, i32) {
    %c0_i32 = arith.constant 0 : i32
    %c0_i32_0 = arith.constant 0 : i32
    %c0_i32_1 = arith.constant 0 : i32
    return %c0_i32, %c0_i32_0 : i32, i32
  }
  func.func @transform_4(%arg0: i32) -> (i32, i32) {
    %c0_i32 = arith.constant 0 : i32
    %c0_i32_0 = arith.constant 0 : i32
    %c0_i32_1 = arith.constant 0 : i32
    return %c0_i32, %c0_i32_0 : i32, i32
  }
  func.func @transform_5(%arg0: i32) -> (i32, i32) {
    %c0_i32 = arith.constant 0 : i32
    %c0_i32_0 = arith.constant 0 : i32
    %c0_i32_1 = arith.constant 0 : i32
    return %c0_i32, %c0_i32_0 : i32, i32
  }
  func.func @transform_6(%arg0: i32) -> (i32, i32) {
    %c0_i32 = arith.constant 0 : i32
    %c0_i32_0 = arith.constant 0 : i32
    %c0_i32_1 = arith.constant 0 : i32
    return %c0_i32, %c0_i32_0 : i32, i32
  }
  func.func @transform_7(%arg0: i32) -> (i32, i32) {
    %c0_i32 = arith.constant 0 : i32
    %c0_i32_0 = arith.constant 0 : i32
    return %arg0, %c0_i32 : i32, i32
  }
  func.func @transform_8(%arg0: i32) -> (i32, i32, i32) {
    %c0_i32 = arith.constant 0 : i32
    %c0_i32_0 = arith.constant 0 : i32
    %c0_i32_1 = arith.constant 0 : i32
    return %arg0, %c0_i32, %c0_i32_0 : i32, i32, i32
  }
}

</mosaic_0001>

<llo_original>
// kernel: tpu_custom_call.1
$region0: #{tpu_custom_call.1}
  #allocation0 [shape = 'u32[]', space=smem, size = 0x4, offset = 0x4, fixed_abs, tag = 'smem constant byte address 0x4 - core index']
  #allocation1 [shape = 'u32[72,128]{1,0:T(1,128)}', space=vmem, size = 0x9000, scoped, tag = 'internal scratch']
  %s0 = inlined_call_operand.vmem [shape: f32[2,8,32], index: 0, kind: input, shape index: {}]
  %s1 = inlined_call_operand.hbm [shape: f32[32,40], index: 1, kind: input, shape index: {}]
  %s2 = inlined_call_operand.hbm [shape: f32[1,40], index: 2, kind: input, shape index: {}]
  %s3 = inlined_call_operand.vmem [shape: f32[40,384], index: 3, kind: input, shape index: {}]
  %s4 = inlined_call_operand.vmem [shape: f32[1,384], index: 4, kind: input, shape index: {}]
  %s5 = inlined_call_operand.vmem [shape: f32[128,5], index: 5, kind: input, shape index: {}]
  %s6 = inlined_call_operand.hbm [shape: f32[5,128], index: 6, kind: input, shape index: {}]
  %s7 = inlined_call_operand.hbm [shape: f32[2,40], index: 7, kind: output, shape index: {0}]
  %s8 = inlined_call_operand.hbm [shape: f32[2,8,40], index: 8, kind: output, shape index: {1}]
  %9 = xla_tuple %s7, %s8
  %s10 = sld [smem:[#allocation0]]
  $region58: #{tpu_custom_call.1} parent=0
    _
  %s12 = ssub.s32 1, %s10
  %s13 = scalar_select 0, %s12, %s10
  $region1: #{tpu_custom_call.1} parent=0
    #allocation2 [shape = 'u8[16384]{0}', space=vmem, size = 0x4000, scoped, tag = 'input window, operand 1, single buffered']
    #allocation3 [shape = 's32[1]{0}', space=sflag, size = 0x4, scoped, tag = 'scoped memory for tpu_custom_call.1']
    #allocation4 [shape = 's32[1]{0}', space=sflag, size = 0x4, scoped, tag = 'scoped memory for tpu_custom_call.1']
    #allocation5 [shape = 'u8[512]{0}', space=vmem, size = 0x400, scoped, tag = 'input window, operand 2, single buffered']
    #allocation6 [shape = 's32[1]{0}', space=sflag, size = 0x4, scoped, tag = 'scoped memory for tpu_custom_call.1']
    #allocation7 [shape = 'u8[4096]{0}', space=vmem, size = 0x1000, scoped, tag = 'input window, operand 6, single buffered']
    #allocation8 [shape = 'u8[1024]{0}', space=vmem, size = 0x400, scoped, tag = 'output window, operand 0, single buffered']
    #allocation9 [shape = 'u8[8192]{0}', space=vmem, size = 0x2000, scoped, tag = 'output window, operand 1, single buffered']
    #allocation10 [shape = 's32[1]{0}', space=sflag, size = 0x4, scoped, tag = 'scoped memory for tpu_custom_call.1']
    %14 = vsyncpa [#allocation3], 0
    %15 = vsyncpa [#allocation6], 0
    %16 = vsyncpa [#allocation4], 0
    %17 = vsyncpa [#allocation10], 0
    // Predicated region
    $region2: #{tpu_custom_call.1} parent=1 // pred_check
      _
    $region3: #{tpu_custom_call.1} parent=1 // pred_check_branch
      %19 = sbr.rel (0) target = $region5
    $region4: #{tpu_custom_call.1} parent=1 // pred_region
      _
    $region5: #{tpu_custom_call.1} parent=1 // pred_fallthru
      _
    // Predicated region
    $region6: #{tpu_custom_call.1} parent=1 // pred_check
      _
    $region7: #{tpu_custom_call.1} parent=1 // pred_check_branch
      %21 = sbr.rel (0) target = $region9
    $region8: #{tpu_custom_call.1} parent=1 // pred_region
      %23 = vsyncadd [#allocation3], 0
      %s24 = sshll.u32 %s1, 4
      %s25 = int_to_ptr.hbm [resolvable:$true] %s24
      %s26 = sshll.u32 [#allocation2], 4
      %s27 = int_to_ptr.vmem [resolvable:$true] %s26
      %32 = dma.hbm_to_vmem [thread:$0]  %s25, 512, %s27, [#allocation3], 128, 128, 8
    $region9: #{tpu_custom_call.1} parent=1 // pred_fallthru
      _
    // Predicated region
    $region10: #{tpu_custom_call.1} parent=1 // pred_check
      _
    $region11: #{tpu_custom_call.1} parent=1 // pred_check_branch
      %34 = sbr.rel (0) target = $region13
    $region12: #{tpu_custom_call.1} parent=1 // pred_region
      %36 = vsyncadd [#allocation6], 0
      %s38 = sshll.u32 %s2, 4
      %s39 = int_to_ptr.hbm [resolvable:$true] %s38
      %s40 = sshll.u32 [#allocation5], 4
      %s41 = int_to_ptr.vmem [resolvable:$true] %s40
      %43 = dma.hbm_to_vmem [thread:$0]  %s39, 16, %s41, [#allocation6]
    $region13: #{tpu_custom_call.1} parent=1 // pred_fallthru
      _
    // Predicated region
    $region14: #{tpu_custom_call.1} parent=1 // pred_check
      _
    $region15: #{tpu_custom_call.1} parent=1 // pred_check_branch
      %45 = sbr.rel (0) target = $region17
    $region16: #{tpu_custom_call.1} parent=1 // pred_region
      _
    $region17: #{tpu_custom_call.1} parent=1 // pred_fallthru
      _
    // Predicated region
    $region18: #{tpu_custom_call.1} parent=1 // pred_check
      _
    $region19: #{tpu_custom_call.1} parent=1 // pred_check_branch
      %47 = sbr.rel (0) target = $region21
    $region20: #{tpu_custom_call.1} parent=1 // pred_region
      _
    $region21: #{tpu_custom_call.1} parent=1 // pred_fallthru
      _
    // Predicated region
    $region22: #{tpu_custom_call.1} parent=1 // pred_check
      _
    $region23: #{tpu_custom_call.1} parent=1 // pred_check_branch
      %49 = sbr.rel (0) target = $region25
    $region24: #{tpu_custom_call.1} parent=1 // pred_region
      _
    $region25: #{tpu_custom_call.1} parent=1 // pred_fallthru
      _
    // Predicated region
    $region26: #{tpu_custom_call.1} parent=1 // pred_check
      _
    $region27: #{tpu_custom_call.1} parent=1 // pred_check_branch
      %51 = sbr.rel (0) target = $region29
    $region28: #{tpu_custom_call.1} parent=1 // pred_region
      %53 = vsyncadd [#allocation6], 0
      %s55 = sshll.u32 %s6, 4
      %s56 = int_to_ptr.hbm [resolvable:$true] %s55
      %s57 = sshll.u32 [#allocation7], 4
      %s58 = int_to_ptr.vmem [resolvable:$true] %s57
      %60 = dma.hbm_to_vmem [thread:$0]  %s56, 128, %s58, [#allocation6]
    $region29: #{tpu_custom_call.1} parent=1 // pred_fallthru
      _
    // Predicated region
    $region30: #{tpu_custom_call.1} parent=1 // pred_check
      _
    $region31: #{tpu_custom_call.1} parent=1 // pred_check_branch
      %62 = sbr.rel (0) target = $region33
    $region32: #{tpu_custom_call.1} parent=1 // pred_region
      %64 = dma.done [#allocation3], 512
    $region33: #{tpu_custom_call.1} parent=1 // pred_fallthru
      _
    // Predicated region
    $region34: #{tpu_custom_call.1} parent=1 // pred_check
      _
    $region35: #{tpu_custom_call.1} parent=1 // pred_check_branch
      %66 = sbr.rel (0) target = $region37
    $region36: #{tpu_custom_call.1} parent=1 // pred_region
      %68 = dma.done [#allocation6], 16
    $region37: #{tpu_custom_call.1} parent=1 // pred_fallthru
      _
    // Predicated region
    $region38: #{tpu_custom_call.1} parent=1 // pred_check
      _
    $region39: #{tpu_custom_call.1} parent=1 // pred_check_branch
      %70 = sbr.rel (0) target = $region41
    $region40: #{tpu_custom_call.1} parent=1 // pred_region
      %72 = dma.done [#allocation6], 128
    $region41: #{tpu_custom_call.1} parent=1 // pred_fallthru
      _
    %v73 = vld [vmem:[%s0] sm:$0xff]
    %v74 = vld [vmem:[%s0 + $0x8] sm:$0xff]
    %v75 = vld [vmem:[#allocation2] sm:$0xff]
    %v76 = vld [vmem:[#allocation2 + $0x8] sm:$0xff]
    %v77 = vld [vmem:[#allocation2 + $0x10] sm:$0xff]
    %v78 = vld [vmem:[#allocation2 + $0x18] sm:$0xff]
    %v79 = vld [vmem:[#allocation5] sm:$0x1]
    %v81 = vperm.slane %v79, 0
    %vm83 = vcmask 261120
    %v85 = vsel %vm83, %v73, 0
    %v88 = vsel %vm83, %v74, 0
    %90 = vmatpush.msra.mxu0 0.0
    %91 = vmatpush.msra.mxu0 0.0
    %92 = vmatpush.msra.mxu0 0.0
    %93 = vmatpush.msra.mxu0 0.0
    %94 = vmatpush.msra.mxu0 0.0
    %95 = vmatpush.msra.mxu0 0.0
    %96 = vmatpush.msra.mxu0 0.0
    %97 = vmatpush.msra.mxu0 0.0
    %98 = vmatpush.msra.mxu0 0.0
    %99 = vmatpush.msra.mxu0 0.0
    %100 = vmatpush.msra.mxu0 0.0
    %101 = vmatpush.msra.mxu0 0.0
    %102 = vmatpush.msra.mxu0 %v78
    %103 = vmatpush.msra.mxu0 %v77
    %104 = vmatpush.msra.mxu0 %v76
    %105 = vmatpush.msra.mxu0 %v75
    %106 = vmatmul.f32.gmra.mxu0 %v85
    %v107 = vpop.f32.mrf.mxu0
    %v108 = vadd.f32 %v81, %v107
    %109 = vmatmul.f32.gmra.mxu0 %v88
    %v110 = vpop.f32.mrf.mxu0
    %v111 = vadd.f32 %v81, %v110
    %112 = vdwg.mxu0
    %vm113 = vcmask 326656
    %114 = vst.msk [vmem:[#allocation9] sm:$0xff] %vm113, %v108
    %115 = vst.msk [vmem:[#allocation9 + $0x8] sm:$0xff] %vm113, %v111
    %v116 = vld [vmem:[%s3] sm:$0xff]
    %v117 = vld [vmem:[%s3 + $0x8] sm:$0xff]
    %v118 = vld [vmem:[%s3 + $0x10] sm:$0xff]
    %v119 = vld [vmem:[%s3 + $0x18] sm:$0xff]
    %v120 = vld [vmem:[%s3 + $0x20] sm:$0xff]
    %v121 = vld [vmem:[%s3 + $0x28] sm:$0xff]
    %v122 = vld [vmem:[%s3 + $0x30] sm:$0xff]
    %v123 = vld [vmem:[%s3 + $0x38] sm:$0xff]
    %v124 = vld [vmem:[%s3 + $0x40] sm:$0xff]
    %v125 = vld [vmem:[%s3 + $0x48] sm:$0xff]
    %v126 = vld [vmem:[%s3 + $0x50] sm:$0xff]
    %v127 = vld [vmem:[%s3 + $0x58] sm:$0xff]
    %v128 = vld [vmem:[%s3 + $0x60] sm:$0xff]
    %v129 = vld [vmem:[%s3 + $0x68] sm:$0xff]
    %v130 = vld [vmem:[%s3 + $0x70] sm:$0xff]
    %v131 = vld [vmem:[%s4] sm:$0x7]
    %v133 = vperm.slane %v131, 0
    %v134 = vperm.slane %v131, 1
    %v135 = vperm.slane %v131, 2
    %v140 = vsel %vm113, %v108, 0
    %v143 = vsel %vm113, %v111, 0
    %145 = vmatpush.msra.mxu0 0.0
    %146 = vmatpush.msra.mxu0 0.0
    %147 = vmatpush.msra.mxu0 0.0
    %148 = vmatpush.msra.mxu0 0.0
    %149 = vmatpush.msra.mxu0 0.0
    %150 = vmatpush.msra.mxu0 0.0
    %151 = vmatpush.msra.mxu0 0.0
    %152 = vmatpush.msra.mxu0 0.0
    %153 = vmatpush.msra.mxu0 0.0
    %154 = vmatpush.msra.mxu0 0.0
    %155 = vmatpush.msra.mxu0 0.0
    %156 = vmatpush.msra.mxu0 %v128
    %157 = vmatpush.msra.mxu0 %v125
    %158 = vmatpush.msra.mxu0 %v122
    %159 = vmatpush.msra.mxu0 %v119
    %160 = vmatpush.msra.mxu0 %v116
    %161 = vmatmul.f32.gmra.mxu0 %v140
    %v162 = vpop.f32.mrf.mxu0
    %v163 = vadd.f32 %v133, %v162
    %164 = vmatmul.f32.gmra.mxu0 %v143
    %v165 = vpop.f32.mrf.mxu0
    %v166 = vadd.f32 %v133, %v165
    %167 = vdwg.mxu0
    %168 = vmatpush.msra.mxu0 0.0
    %169 = vmatpush.msra.mxu0 0.0
    %170 = vmatpush.msra.mxu0 0.0
    %171 = vmatpush.msra.mxu0 0.0
    %172 = vmatpush.msra.mxu0 0.0
    %173 = vmatpush.msra.mxu0 0.0
    %174 = vmatpush.msra.mxu0 0.0
    %175 = vmatpush.msra.mxu0 0.0
    %176 = vmatpush.msra.mxu0 0.0
    %177 = vmatpush.msra.mxu0 0.0
    %178 = vmatpush.msra.mxu0 0.0
    %179 = vmatpush.msra.mxu0 %v129
    %180 = vmatpush.msra.mxu0 %v126
    %181 = vmatpush.msra.mxu0 %v123
    %182 = vmatpush.msra.mxu0 %v120
    %183 = vmatpush.msra.mxu0 %v117
    %184 = vmatmul.f32.gmra.mxu0 %v140
    %v185 = vpop.f32.mrf.mxu0
    %v186 = vadd.f32 %v134, %v185
    %187 = vmatmul.f32.gmra.mxu0 %v143
    %v188 = vpop.f32.mrf.mxu0
    %v189 = vadd.f32 %v134, %v188
    %190 = vdwg.mxu0
    %191 = vmatpush.msra.mxu0 0.0
    %192 = vmatpush.msra.mxu0 0.0
    %193 = vmatpush.msra.mxu0 0.0
    %194 = vmatpush.msra.mxu0 0.0
    %195 = vmatpush.msra.mxu0 0.0
    %196 = vmatpush.msra.mxu0 0.0
    %197 = vmatpush.msra.mxu0 0.0
    %198 = vmatpush.msra.mxu0 0.0
    %199 = vmatpush.msra.mxu0 0.0
    %200 = vmatpush.msra.mxu0 0.0
    %201 = vmatpush.msra.mxu0 0.0
    %202 = vmatpush.msra.mxu0 %v130
    %203 = vmatpush.msra.mxu0 %v127
    %204 = vmatpush.msra.mxu0 %v124
    %205 = vmatpush.msra.mxu0 %v121
    %206 = vmatpush.msra.mxu0 %v118
    %207 = vmatmul.f32.gmra.mxu0 %v140
    %v208 = vpop.f32.mrf.mxu0
    %v209 = vadd.f32 %v135, %v208
    %210 = vmatmul.f32.gmra.mxu0 %v143
    %v211 = vpop.f32.mrf.mxu0
    %v212 = vadd.f32 %v135, %v211
    %213 = vdwg.mxu0
    %v216 = vrot.slane %v163, 1
    %v217 = vrot.slane %v163, 2
    %v218 = vrot.slane %v163, 3
    %v219 = vrot.slane %v163, 4
    %v220 = vrot.slane %v163, 5
    %v221 = vrot.slane %v163, 6
    %v222 = vrot.slane %v163, 7
    %v223 = vrot.slane %v166, 1
    %v224 = vrot.slane %v166, 2
    %v225 = vrot.slane %v166, 3
    %v226 = vrot.slane %v166, 4
    %v227 = vrot.slane %v166, 5
    %v228 = vrot.slane %v166, 6
    %v229 = vrot.slane %v166, 7
    %v230 = vperm.slane %v163, 0
    %v231 = vperm.slane %v216, 0
    %v232 = vperm.slane %v217, 0
    %v233 = vperm.slane %v218, 0
    %v234 = vperm.slane %v219, 0
    %v235 = vperm.slane %v220, 0
    %v236 = vperm.slane %v221, 0
    %v237 = vperm.slane %v222, 0
    %v238 = vperm.slane %v166, 0
    %v239 = vperm.slane %v223, 0
    %v240 = vperm.slane %v224, 0
    %v241 = vperm.slane %v225, 0
    %v242 = vperm.slane %v226, 0
    %v243 = vperm.slane %v227, 0
    %v244 = vperm.slane %v228, 0
    %v245 = vperm.slane %v229, 0
    %v262 = vmul.f32 %v230, %v186
    %v263 = vmul.f32 %v231, %v186
    %v264 = vmul.f32 %v232, %v186
    %v265 = vmul.f32 %v233, %v186
    %v266 = vmul.f32 %v234, %v186
    %v267 = vmul.f32 %v235, %v186
    %v268 = vmul.f32 %v236, %v186
    %v269 = vmul.f32 %v237, %v186
    %v270 = vmul.f32 %v238, %v189
    %v271 = vmul.f32 %v239, %v189
    %v272 = vmul.f32 %v240, %v189
    %v273 = vmul.f32 %v241, %v189
    %v274 = vmul.f32 %v242, %v189
    %v275 = vmul.f32 %v243, %v189
    %v276 = vmul.f32 %v244, %v189
    %v277 = vmul.f32 %v245, %v189
    %v278 = vld [vmem:[%s5] sm:$0xff]
    %v279 = vld [vmem:[%s5 + $0x8] sm:$0xff]
    %v280 = vld [vmem:[%s5 + $0x10] sm:$0xff]
    %v281 = vld [vmem:[%s5 + $0x18] sm:$0xff]
    %v282 = vld [vmem:[%s5 + $0x20] sm:$0xff]
    %v283 = vld [vmem:[%s5 + $0x28] sm:$0xff]
    %v284 = vld [vmem:[%s5 + $0x30] sm:$0xff]
    %v285 = vld [vmem:[%s5 + $0x38] sm:$0xff]
    %v286 = vld [vmem:[%s5 + $0x40] sm:$0xff]
    %v287 = vld [vmem:[%s5 + $0x48] sm:$0xff]
    %v288 = vld [vmem:[%s5 + $0x50] sm:$0xff]
    %v289 = vld [vmem:[%s5 + $0x58] sm:$0xff]
    %v290 = vld [vmem:[%s5 + $0x60] sm:$0xff]
    %v291 = vld [vmem:[%s5 + $0x68] sm:$0xff]
    %v292 = vld [vmem:[%s5 + $0x70] sm:$0xff]
    %v293 = vld [vmem:[%s5 + $0x78] sm:$0xff]
    %294 = vmatpush.msra.mxu0 %v293
    %295 = vmatpush.msra.mxu0 %v292
    %296 = vmatpush.msra.mxu0 %v291
    %297 = vmatpush.msra.mxu0 %v290
    %298 = vmatpush.msra.mxu0 %v289
    %299 = vmatpush.msra.mxu0 %v288
    %300 = vmatpush.msra.mxu0 %v287
    %301 = vmatpush.msra.mxu0 %v286
    %302 = vmatpush.msra.mxu0 %v285
    %303 = vmatpush.msra.mxu0 %v284
    %304 = vmatpush.msra.mxu0 %v283
    %305 = vmatpush.msra.mxu0 %v282
    %306 = vmatpush.msra.mxu0 %v281
    %307 = vmatpush.msra.mxu0 %v280
    %308 = vmatpush.msra.mxu0 %v279
    %309 = vmatpush.msra.mxu0 %v278
    %310 = vmatmul.f32.gmra.mxu0 %v262
    %v311 = vpop.f32.mrf.mxu0
    %v312 = vadd.f32 0.0, %v311
    %313 = vmatmul.f32.gmra.mxu0 %v263
    %v314 = vpop.f32.mrf.mxu0
    %v315 = vadd.f32 0.0, %v314
    %316 = vmatmul.f32.gmra.mxu0 %v264
    %v317 = vpop.f32.mrf.mxu0
    %v318 = vadd.f32 0.0, %v317
    %319 = vmatmul.f32.gmra.mxu0 %v265
    %v320 = vpop.f32.mrf.mxu0
    %v321 = vadd.f32 0.0, %v320
    %322 = vmatmul.f32.gmra.mxu0 %v266
    %v323 = vpop.f32.mrf.mxu0
    %v324 = vadd.f32 0.0, %v323
    %325 = vmatmul.f32.gmra.mxu0 %v267
    %v326 = vpop.f32.mrf.mxu0
    %v327 = vadd.f32 0.0, %v326
    %328 = vmatmul.f32.gmra.mxu0 %v268
    %v329 = vpop.f32.mrf.mxu0
    %v330 = vadd.f32 0.0, %v329
    %331 = vmatmul.f32.gmra.mxu0 %v269
    %v332 = vpop.f32.mrf.mxu0
    %v333 = vadd.f32 0.0, %v332
    %334 = vmatmul.f32.gmra.mxu0 %v270
    %v335 = vpop.f32.mrf.mxu0
    %v336 = vadd.f32 0.0, %v335
    %337 = vmatmul.f32.gmra.mxu0 %v271
    %v338 = vpop.f32.mrf.mxu0
    %v339 = vadd.f32 0.0, %v338
    %340 = vmatmul.f32.gmra.mxu0 %v272
    %v341 = vpop.f32.mrf.mxu0
    %v342 = vadd.f32 0.0, %v341
    %343 = vmatmul.f32.gmra.mxu0 %v273
    %v344 = vpop.f32.mrf.mxu0
    %v345 = vadd.f32 0.0, %v344
    %346 = vmatmul.f32.gmra.mxu0 %v274
    %v347 = vpop.f32.mrf.mxu0
    %v348 = vadd.f32 0.0, %v347
    %349 = vmatmul.f32.gmra.mxu0 %v275
    %v350 = vpop.f32.mrf.mxu0
    %v351 = vadd.f32 0.0, %v350
    %352 = vmatmul.f32.gmra.mxu0 %v276
    %v353 = vpop.f32.mrf.mxu0
    %v354 = vadd.f32 0.0, %v353
    %355 = vmatmul.f32.gmra.mxu0 %v277
    %v356 = vpop.f32.mrf.mxu0
    %v357 = vadd.f32 0.0, %v356
    %358 = vdwg.mxu0
    %v359 = vmax.f32 %v312, 0.0
    %v360 = vmax.f32 %v315, 0.0
    %v361 = vmax.f32 %v318, 0.0
    %v362 = vmax.f32 %v321, 0.0
    %v363 = vmax.f32 %v324, 0.0
    %v364 = vmax.f32 %v327, 0.0
    %v365 = vmax.f32 %v330, 0.0
    %v366 = vmax.f32 %v333, 0.0
    %v367 = vmax.f32 %v336, 0.0
    %v368 = vmax.f32 %v339, 0.0
    %v369 = vmax.f32 %v342, 0.0
    %v370 = vmax.f32 %v345, 0.0
    %v371 = vmax.f32 %v348, 0.0
    %v372 = vmax.f32 %v351, 0.0
    %v373 = vmax.f32 %v354, 0.0
    %v374 = vmax.f32 %v357, 0.0
    %vm375 = vcmask 39936
    %v376 = vsel %vm375, %v359, 0.0
    %v377 = vsel %vm375, %v360, 0.0
    %v378 = vadd.f32 %v376, %v377
    %v379 = vsel %vm375, %v361, 0.0
    %v380 = vadd.f32 %v378, %v379
    %v381 = vsel %vm375, %v362, 0.0
    %v382 = vadd.f32 %v380, %v381
    %v383 = vsel %vm375, %v363, 0.0
    %v384 = vadd.f32 %v382, %v383
    %v385 = vsel %vm375, %v364, 0.0
    %v386 = vadd.f32 %v384, %v385
    %v387 = vsel %vm375, %v365, 0.0
    %v388 = vadd.f32 %v386, %v387
    %v389 = vsel %vm375, %v366, 0.0
    %v390 = vadd.f32 %v388, %v389
    %v391 = vsel %vm375, %v367, 0.0
    %v392 = vsel %vm375, %v368, 0.0
    %v393 = vadd.f32 %v391, %v392
    %v394 = vsel %vm375, %v369, 0.0
    %v395 = vadd.f32 %v393, %v394
    %v396 = vsel %vm375, %v370, 0.0
    %v397 = vadd.f32 %v395, %v396
    %v398 = vsel %vm375, %v371, 0.0
    %v399 = vadd.f32 %v397, %v398
    %v400 = vsel %vm375, %v372, 0.0
    %v401 = vadd.f32 %v399, %v400
    %v402 = vsel %vm375, %v373, 0.0
    %v403 = vadd.f32 %v401, %v402
    %v404 = vsel %vm375, %v374, 0.0
    %v405 = vadd.f32 %v403, %v404
    %v406 = vld [vmem:[#allocation7] sm:$0x1f]
    %v408 = vsel %vm375, %v390, 0
    %v411 = vsel %vm375, %v405, 0
    %vm413 = vcmask 1044480
    %v415 = vsel %vm413, %v406, 0
    %417 = vmatpush.msra.mxu0 0.0
    %418 = vmatpush.msra.mxu0 0.0
    %419 = vmatpush.msra.mxu0 0.0
    %420 = vmatpush.msra.mxu0 0.0
    %421 = vmatpush.msra.mxu0 0.0
    %422 = vmatpush.msra.mxu0 0.0
    %423 = vmatpush.msra.mxu0 0.0
    %424 = vmatpush.msra.mxu0 0.0
    %425 = vmatpush.msra.mxu0 0.0
    %426 = vmatpush.msra.mxu0 0.0
    %427 = vmatpush.msra.mxu0 0.0
    %428 = vmatpush.msra.mxu0 0.0
    %429 = vmatpush.msra.mxu0 0.0
    %430 = vmatpush.msra.mxu0 0.0
    %431 = vmatpush.msra.mxu0 0.0
    %432 = vmatpush.msra.mxu0 %v415
    %433 = vmatmul.f32.gmra.mxu0 %v408
    %v434 = vpop.f32.mrf.mxu0
    %v435 = vadd.f32 0.0, %v434
    %436 = vmatmul.f32.gmra.mxu0 %v411
    %v437 = vpop.f32.mrf.mxu0
    %v438 = vadd.f32 0.0, %v437
    %439 = vdwg.mxu0
    %v440 = vmul.f32 %v435, %v209
    %v441 = vmul.f32 %v438, %v212
    %v442 = vrot.slane %v440, 4
    %v443 = vadd.f32 %v440, %v442
    %v444 = vrot.slane %v443, 2
    %v445 = vadd.f32 %v443, %v444
    %v446 = vrot.slane %v445, 1
    %v447 = vadd.f32 %v445, %v446
    %v448 = vrot.slane %v441, 4
    %v449 = vadd.f32 %v441, %v448
    %v450 = vrot.slane %v449, 2
    %v451 = vadd.f32 %v449, %v450
    %v452 = vrot.slane %v451, 1
    %v453 = vadd.f32 %v451, %v452
    %vm456 = vcmask 1041409
    %v457 = vsel %vm456, %v453, %v447
    %vm459 = vcmask 320512
    %460 = vst.msk [vmem:[#allocation8] sm:$0x3] %vm459, %v457
    // Predicated region
    $region42: #{tpu_custom_call.1} parent=1 // pred_check
      _
    $region43: #{tpu_custom_call.1} parent=1 // pred_check_branch
      %462 = sbr.rel (0) target = $region45
    $region44: #{tpu_custom_call.1} parent=1 // pred_region
      %464 = vsyncadd [#allocation4], 0
      %s466 = sshll.u32 [#allocation8], 4
      %s467 = int_to_ptr.vmem [resolvable:$true] %s466
      %s468 = sshll.u32 %s7, 4
      %s469 = int_to_ptr.hbm [resolvable:$true] %s468
      %471 = dma.vmem_to_hbm [thread:$0]  %s467, 32, %s469, [#allocation4]
    $region45: #{tpu_custom_call.1} parent=1 // pred_fallthru
      _
    // Predicated region
    $region46: #{tpu_custom_call.1} parent=1 // pred_check
      _
    $region47: #{tpu_custom_call.1} parent=1 // pred_check_branch
      %473 = sbr.rel (0) target = $region49
    $region48: #{tpu_custom_call.1} parent=1 // pred_region
      %475 = vsyncadd [#allocation10], 0
      %s476 = sshll.u32 [#allocation9], 4
      %s477 = int_to_ptr.vmem [resolvable:$true] %s476
      %s478 = sshll.u32 %s8, 4
      %s479 = int_to_ptr.hbm [resolvable:$true] %s478
      %484 = dma.vmem_to_hbm [thread:$0]  %s477, 256, %s479, [#allocation10], 128, 128, 8
    $region49: #{tpu_custom_call.1} parent=1 // pred_fallthru
      _
    // Predicated region
    $region50: #{tpu_custom_call.1} parent=1 // pred_check
      _
    $region51: #{tpu_custom_call.1} parent=1 // pred_check_branch
      %486 = sbr.rel (0) target = $region53
    $region52: #{tpu_custom_call.1} parent=1 // pred_region
      %488 = dma.done [#allocation4], 32
    $region53: #{tpu_custom_call.1} parent=1 // pred_fallthru
      _
    // Predicated region
    $region54: #{tpu_custom_call.1} parent=1 // pred_check
      _
    $region55: #{tpu_custom_call.1} parent=1 // pred_check_branch
      %490 = sbr.rel (0) target = $region57
    $region56: #{tpu_custom_call.1} parent=1 // pred_region
      %492 = dma.done [#allocation10], 256
    $region57: #{tpu_custom_call.1} parent=1 // pred_fallthru
      _
    %493 = vsyncpa [#allocation3], 1
    %494 = vsyncpa [#allocation6], 1
    %495 = vsyncpa [#allocation4], 1
    %496 = vsyncpa [#allocation10], 1

</llo_original>
